<compile_context>
chip_gen: v7x
topology: tpu7x:2x2x1
jax: 0.10.0
libtpu: 0.0.40
codegen_flags: <defaults>
</compile_context>

<pallas_src>
from functools import partial

import numpy as np
import jax
import jax.numpy as jnp
from jax.experimental import pallas as pl
from jax.experimental.pallas import tpu as pltpu


def _ancestor_matrices(depth):
    """Static (n_int, L) matrices: A[a,l]=1 if leaf l passes node a on the 'g' branch,
    Abar[a,l]=1 if it passes node a on the '1-g' branch (block-concat ordering)."""
    n_int = 2 ** depth - 1
    A = np.zeros((n_int, 1), np.float32)
    Abar = np.zeros((n_int, 1), np.float32)
    off = 0
    for d in range(depth):
        n = 2 ** d
        E = np.zeros((n_int, n), np.float32)
        for j in range(n):
            E[off + j, j] = 1.0
        A = np.concatenate([A + E, A], axis=1)
        Abar = np.concatenate([Abar, Abar + E], axis=1)
        off += n
    return A, Abar


def _tree_kernel(gate_pad, x_ref, w1_ref, b1_ref, r_ref, s_ref, out_ref):
    """One batch tile: fused gate+leaf matmul, log-space routing matmul,
    exp, and ensemble reduction as a matmul into a lane-dense output."""
    x = x_ref[...].astype(jnp.float32)

    # Fused matmul: [gate logits (padded to gate_pad lanes) | leaf logits].
    h = jnp.dot(x, w1_ref[...], preferred_element_type=jnp.float32) + b1_ref[...]
    zb = h[:, :gate_pad]            # (TB, GP)  gate logits (zero in padded lanes)
    leaf = h[:, gate_pad:]          # (TB, C*L) leaf logits

    # Stable log-sigmoid (f32 elementwise -> VPU/EUP).
    lsz = jnp.minimum(zb, 0.0) - jnp.log(1.0 + jnp.exp(-jnp.abs(zb)))

    # log path (already tiled over classes):
    #   log path = logsig(z) @ (A + Abar) - z @ Abar   (padded rows of R are zero).
    routing_in = jnp.concatenate([lsz, zb], axis=-1)          # (TB, 2*GP)
    log_path = jnp.dot(routing_in, r_ref[...],
                       preferred_element_type=jnp.float32)    # (TB, C*L)
    path_tiled = jnp.exp(log_path)

    # Ensemble: out[:, c] = sum_l leaf[:, c*L+l] * path[:, l]  via 0/1 selection matmul.
    out = jnp.dot(leaf * path_tiled, s_ref[...],
                  preferred_element_type=jnp.float32)          # (TB, OUT_PAD)
    out_ref[...] = out.astype(out_ref.dtype)


def tree_model_forward(x, wg, bg, wl, bl, *, depth, num_classes, tile_b=None):
    b, d = x.shape
    num_leaves = 2 ** depth
    n_int = num_leaves - 1
    cl = num_classes * num_leaves
    assert wg.shape == (d, n_int) and wl.shape == (d, cl)

    # Lane-aligned padding for the fused gate block and the output class axis.
    gate_pad = ((n_int + 127) // 128) * 128
    out_pad = ((num_classes + 127) // 128) * 128

    # Fused weight/bias: [gate block | leaf block].
    w1 = jnp.zeros((d, gate_pad + cl), jnp.float32)
    w1 = w1.at[:, :n_int].set(wg).at[:, gate_pad:].set(wl)
    b1 = jnp.zeros((1, gate_pad + cl), jnp.float32)
    b1 = b1.at[:, :n_int].set(jnp.reshape(bg, (1, n_int)))
    b1 = b1.at[:, gate_pad:].set(jnp.reshape(bl, (1, cl)))

    # Static routing matrix R (2*GP, C*L): rows [0:n_int] multiply logsig(z),
    # rows [GP:GP+n_int] multiply z; already tiled over classes.
    A, Abar = _ancestor_matrices(depth)
    r_np = np.zeros((2 * gate_pad, cl), np.float32)
    r_np[:n_int, :] = np.tile(A + Abar, (1, num_classes))
    r_np[gate_pad:gate_pad + n_int, :] = np.tile(-Abar, (1, num_classes))
    r_mat = jnp.asarray(r_np)

    # Static selection matrix S (C*L, OUT_PAD): S[c*L + l, c] = 1.
    s_np = np.zeros((cl, out_pad), np.float32)
    for c in range(num_classes):
        s_np[c * num_leaves:(c + 1) * num_leaves, c] = 1.0
    s_mat = jnp.asarray(s_np)

    # Batch tiling: large tiles, but keep >= 2 grid steps (v7x has 2 TensorCores).
    if tile_b is None:
        tile_b = min(512, max(8, ((b // 2 + 7) // 8) * 8))
    b_pad = pl.cdiv(b, tile_b) * tile_b
    if b_pad != b:
        x = jnp.pad(x, ((0, b_pad - b), (0, 0)))
    grid = (b_pad // tile_b,)

    nf = gate_pad + cl
    cost = pl.CostEstimate(
        flops=2 * b_pad * (d * nf + 2 * gate_pad * cl + cl * out_pad),
        transcendentals=2 * b_pad * (gate_pad + cl),
        bytes_accessed=4 * (b_pad * d + d * nf + nf + 2 * gate_pad * cl
                            + cl * out_pad + b_pad * out_pad),
    )

    out = pl.pallas_call(
        partial(_tree_kernel, gate_pad),
        out_shape=jax.ShapeDtypeStruct((b_pad, out_pad), jnp.float32),
        grid=grid,
        in_specs=[
            pl.BlockSpec((tile_b, d), lambda i: (i, 0)),          # x tile
            pl.BlockSpec((d, nf), lambda i: (0, 0)),              # fused weights
            pl.BlockSpec((1, nf), lambda i: (0, 0)),              # fused bias
            pl.BlockSpec((2 * gate_pad, cl), lambda i: (0, 0)),   # routing matrix
            pl.BlockSpec((cl, out_pad), lambda i: (0, 0)),        # selection matrix
        ],
        out_specs=pl.BlockSpec((tile_b, out_pad), lambda i: (i, 0)),
        compiler_params=pltpu.CompilerParams(dimension_semantics=("parallel",)),
        cost_estimate=cost,
    )(x, w1, b1, r_mat, s_mat)

    return out[:b, :num_classes]


def tree_model_reference(x, wg, bg, wl, bl, *, depth, num_classes):
    """Pure-JAX reference with the module's semantics (product-form routing)."""
    gates = jax.nn.sigmoid(x @ wg + bg)
    num_leaves = 2 ** depth
    path = jnp.ones((x.shape[0], 1), jnp.float32)
    off = 0
    for d in range(depth):
        n = 2 ** d
        g = gates[:, off:off + n]
        path = jnp.concatenate([path * g, path * (1.0 - g)], axis=-1)
        off += n
    logit = (x @ wl + bl).reshape(x.shape[0], num_classes, num_leaves)
    return jnp.einsum("bcl,bl->bc", logit, path)


if __name__ == "__main__":
    B, D = 16, 32          # batch, features
    DEPTH = 3              # 8 leaves, 7 internal nodes
    C = 4                  # output classes
    NUM_LEAVES = 2 ** DEPTH
    N_INTERNAL = NUM_LEAVES - 1

    key = jax.random.PRNGKey(0)
    kx, kwg, kbg, kwl, kbl = jax.random.split(key, 5)
    x = jax.random.normal(kx, (B, D), jnp.float32)
    wg = 0.1 * jax.random.normal(kwg, (D, N_INTERNAL), jnp.float32)
    bg = 0.1 * jax.random.normal(kbg, (1, N_INTERNAL), jnp.float32)
    wl = 0.1 * jax.random.normal(kwl, (D, C * NUM_LEAVES), jnp.float32)
    bl = 0.1 * jax.random.normal(kbl, (1, C * NUM_LEAVES), jnp.float32)

    out = tree_model_forward(x, wg, bg, wl, bl, depth=DEPTH, num_classes=C)
    out = jax.block_until_ready(out)

    ref = tree_model_reference(x, wg, bg, wl, bl, depth=DEPTH, num_classes=C)
    assert out.shape == (B, C), out.shape
    assert jnp.allclose(out, ref, rtol=1e-4, atol=1e-4), (out, ref)
    print("KERNEL_OK")
</pallas_src>

<mosaic_0001>
module attributes {stable_mosaic.version = 11 : i64} {
  func.func @_tree_kernel(%arg0: i32, %arg1: memref<8x32xf32, #tpu.memory_space<vmem>>, %arg2: memref<32x160xf32, #tpu.memory_space<vmem>>, %arg3: memref<1x160xf32, #tpu.memory_space<vmem>>, %arg4: memref<256x32xf32, #tpu.memory_space<vmem>>, %arg5: memref<32x128xf32, #tpu.memory_space<vmem>>, %arg6: memref<8x128xf32, #tpu.memory_space<vmem>>) attributes {dimension_semantics = [#tpu.dimension_semantics<parallel>], iteration_bounds = array<i64: 2>, scalar_prefetch = 0 : i64, scratch_operands = 0 : i64, tpu.core_type = #tpu.core_type<tc>, window_params = [{transform_indices = @transform_0, window_bounds = array<i64: 8, 32>}, {pipeline_mode = #tpu.pipeline_mode<synchronous>, transform_indices = @transform_1, window_bounds = array<i64: 32, 160>}, {pipeline_mode = #tpu.pipeline_mode<synchronous>, transform_indices = @transform_2, window_bounds = array<i64: 1, 160>}, {pipeline_mode = #tpu.pipeline_mode<synchronous>, transform_indices = @transform_3, window_bounds = array<i64: 256, 32>}, {pipeline_mode = #tpu.pipeline_mode<synchronous>, transform_indices = @transform_4, window_bounds = array<i64: 32, 128>}, {transform_indices = @transform_5, window_bounds = array<i64: 8, 128>}]} {
    %c0 = arith.constant 0 : index
    %c0_0 = arith.constant 0 : index
    %0 = vector.load %arg1[%c0, %c0_0] : memref<8x32xf32, #tpu.memory_space<vmem>>, vector<8x32xf32>
    %c0_1 = arith.constant 0 : index
    %c0_2 = arith.constant 0 : index
    %1 = vector.load %arg2[%c0_1, %c0_2] : memref<32x160xf32, #tpu.memory_space<vmem>>, vector<32x160xf32>
    %cst = arith.constant dense<0.000000e+00> : vector<8x160xf32>
    %2 = tpu.matmul %0, %1, %cst {dimension_numbers = #tpu.dot_dimension_numbers<[1], [0], [0], [1], [0, 0, 1, 1], [], []>} : vector<8x32xf32>, vector<32x160xf32>, vector<8x160xf32> -> vector<8x160xf32>
    %c0_3 = arith.constant 0 : index
    %c0_4 = arith.constant 0 : index
    %3 = vector.load %arg3[%c0_3, %c0_4] : memref<1x160xf32, #tpu.memory_space<vmem>>, vector<1x160xf32>
    %4 = vector.broadcast %3 : vector<1x160xf32> to vector<8x160xf32>
    %5 = arith.addf %2, %4 : vector<8x160xf32>
    %6 = vector.extract_strided_slice %5 {offsets = [0, 0], sizes = [8, 128], strides = [1, 1]} : vector<8x160xf32> to vector<8x128xf32>
    %7 = vector.extract_strided_slice %5 {offsets = [0, 128], sizes = [8, 32], strides = [1, 1]} : vector<8x160xf32> to vector<8x32xf32>
    %cst_5 = arith.constant 0.000000e+00 : f32
    %8 = vector.broadcast %cst_5 : f32 to vector<8x128xf32>
    %9 = arith.minimumf %6, %8 : vector<8x128xf32>
    %10 = math.absf %6 : vector<8x128xf32>
    %cst_6 = arith.constant 0.000000e+00 : f32
    %11 = vector.broadcast %cst_6 : f32 to vector<8x128xf32>
    %12 = arith.subf %11, %10 : vector<8x128xf32>
    %13 = math.exp %12 : vector<8x128xf32>
    %cst_7 = arith.constant 1.000000e+00 : f32
    %14 = vector.broadcast %cst_7 : f32 to vector<8x128xf32>
    %15 = arith.addf %14, %13 : vector<8x128xf32>
    %16 = math.log %15 : vector<8x128xf32>
    %17 = arith.subf %9, %16 : vector<8x128xf32>
    %18 = tpu.concatenate %17, %6 in 1 : vector<8x128xf32>, vector<8x128xf32> -> vector<8x256xf32>
    %c0_8 = arith.constant 0 : index
    %c0_9 = arith.constant 0 : index
    %19 = vector.load %arg4[%c0_8, %c0_9] : memref<256x32xf32, #tpu.memory_space<vmem>>, vector<256x32xf32>
    %cst_10 = arith.constant dense<0.000000e+00> : vector<8x32xf32>
    %20 = tpu.matmul %18, %19, %cst_10 {dimension_numbers = #tpu.dot_dimension_numbers<[1], [0], [0], [1], [0, 0, 1, 1], [], []>} : vector<8x256xf32>, vector<256x32xf32>, vector<8x32xf32> -> vector<8x32xf32>
    %21 = math.exp %20 : vector<8x32xf32>
    %22 = arith.mulf %7, %21 : vector<8x32xf32>
    %c0_11 = arith.constant 0 : index
    %c0_12 = arith.constant 0 : index
    %23 = vector.load %arg5[%c0_11, %c0_12] : memref<32x128xf32, #tpu.memory_space<vmem>>, vector<32x128xf32>
    %cst_13 = arith.constant dense<0.000000e+00> : vector<8x128xf32>
    %24 = tpu.matmul %22, %23, %cst_13 {dimension_numbers = #tpu.dot_dimension_numbers<[1], [0], [0], [1], [0, 0, 1, 1], [], []>} : vector<8x32xf32>, vector<32x128xf32>, vector<8x128xf32> -> vector<8x128xf32>
    %c0_14 = arith.constant 0 : index
    %c0_15 = arith.constant 0 : index
    %25 = vector.load %arg6[%c0_14, %c0_15] : memref<8x128xf32, #tpu.memory_space<vmem>>, vector<8x128xf32>
    tpu.vector_store %arg6[%c0_14, %c0_15], %24 {strides = array<i32>} : memref<8x128xf32, #tpu.memory_space<vmem>>, vector<8x128xf32>,
    return
  }
  func.func @transform_0(%arg0: i32) -> (i32, i32) {
    %c0_i32 = arith.constant 0 : i32
    %c0_i32_0 = arith.constant 0 : i32
    return %arg0, %c0_i32 : i32, i32
  }
  func.func @transform_1(%arg0: i32) -> (i32, i32) {
    %c0_i32 = arith.constant 0 : i32
    %c0_i32_0 = arith.constant 0 : i32
    %c0_i32_1 = arith.constant 0 : i32
    return %c0_i32, %c0_i32_0 : i32, i32
  }
  func.func @transform_2(%arg0: i32) -> (i32, i32) {
    %c0_i32 = arith.constant 0 : i32
    %c0_i32_0 = arith.constant 0 : i32
    %c0_i32_1 = arith.constant 0 : i32
    return %c0_i32, %c0_i32_0 : i32, i32
  }
  func.func @transform_3(%arg0: i32) -> (i32, i32) {
    %c0_i32 = arith.constant 0 : i32
    %c0_i32_0 = arith.constant 0 : i32
    %c0_i32_1 = arith.constant 0 : i32
    return %c0_i32, %c0_i32_0 : i32, i32
  }
  func.func @transform_4(%arg0: i32) -> (i32, i32) {
    %c0_i32 = arith.constant 0 : i32
    %c0_i32_0 = arith.constant 0 : i32
    %c0_i32_1 = arith.constant 0 : i32
    return %c0_i32, %c0_i32_0 : i32, i32
  }
  func.func @transform_5(%arg0: i32) -> (i32, i32) {
    %c0_i32 = arith.constant 0 : i32
    %c0_i32_0 = arith.constant 0 : i32
    return %arg0, %c0_i32 : i32, i32
  }
}

</mosaic_0001>

<llo_original>
// kernel: tpu_custom_call.1
$region0: #{tpu_custom_call.1}
  #allocation0 [shape = 'u32[]', space=smem, size = 0x4, offset = 0x4, fixed_abs, tag = 'smem constant byte address 0x4 - core index']
  #allocation1 [shape = 'u32[144,128]{1,0:T(1,128)}', space=vmem, size = 0x12000, scoped, tag = 'internal scratch']
  %s0 = inlined_call_operand.vmem [shape: f32[16,32], index: 0, kind: input, shape index: {}]
  %s1 = inlined_call_operand.vmem [shape: f32[32,160], index: 1, kind: input, shape index: {}]
  %s2 = inlined_call_operand.vmem [shape: f32[1,160], index: 2, kind: input, shape index: {}]
  %s3 = inlined_call_operand.vmem [shape: f32[256,32], index: 3, kind: input, shape index: {}]
  %s4 = inlined_call_operand.vmem [shape: f32[32,128], index: 4, kind: input, shape index: {}]
  %s5 = inlined_call_operand.hbm [shape: f32[16,128], index: 5, kind: output, shape index: {}]
  %s6 = sld [smem:[#allocation0]]
  $region53: #{tpu_custom_call.1} parent=0
    _
  %s8 = ssub.s32 1, %s6
  %s9 = scalar_select 0, %s8, %s6
  $region1: #{tpu_custom_call.1} parent=0
    #allocation2 [shape = 'u8[8192]{0}', space=vmem, size = 0x2000, scoped, tag = 'output window, operand 0']
    #allocation3 [shape = 's32[2]{0}', space=sflag, size = 0x8, scoped, tag = 'scoped memory for tpu_custom_call.1']
    %10 = vsyncpa [#allocation3], 0
    %s11 = scalar_lea.sflag [#allocation3], 1
    %12 = vsyncpa %s11, 0
    loop: start=0, step=1, limit=4
    $region2: #{tpu_custom_call.1} parent=1 // loop_pre_header
      _
    $region3: #{tpu_custom_call.1} parent=1 // loop_header
      %s14 = sphi 0, %s18
      %p15 = scmp.ge.s32.totalorder %s14, 4
      %s24 = sphi 0, %s26
      %s27 = sphi 0, %s24
      %s28 = sphi 0, %s27
      %s44 = sphi 0, %s28
      %s48 = sphi 0, %s48
      %s50 = sphi 0, %s48
      %s51 = sphi 0, %s50
      %s65 = sphi 0, %s51
      %s69 = sphi 0, %s69
      %s71 = sphi 0, %s69
      %s72 = sphi 0, %s71
      %s86 = sphi 0, %s72
      %s90 = sphi 0, %s90
      %s92 = sphi 0, %s90
      %s93 = sphi 0, %s92
      %s107 = sphi 0, %s93
      %s111 = sphi 0, %s111
      %s113 = sphi 0, %s111
      %s114 = sphi 0, %s113
      %s128 = sphi 0, %s114
      %s134 = sphi 0, %s136
      %s137 = sphi 0, %s134
      %s138 = sphi 0, %s137
      %s154 = sphi 0, %s138
    $region4: #{tpu_custom_call.1} parent=1 // loop_header_branch
      %17 = sbr.rel (%p15) target = $region8
    $region5: #{tpu_custom_call.1} parent=1 // loop_body
      %s19 = ssub.s32 %s14, 1
      %s20 = ssub.s32 %s14, 2
      %s21 = sadd.s32 %s14, 1
      %s22 = ssub.s32 %s14, %s21
      %p23 = scmp.eq.s32.totalorder %s22, 0
      %s25 = sadd.s32 %s24, 1
      %s26 = scalar_select %p23, %s24, %s25
      %p29 = pneg %p23
      %p30 = scmp.eq.s32.totalorder %s14, 1
      %p31 = por %p29, %p30
      %p32 = scmp.ne.s32.totalorder %s24, %s27
      %p33 = scmp.eq.s32.totalorder %s14, 0
      %p34 = por %p32, %p33
      %p35 = scmp.ne.s32.totalorder %s24, %s27
      %p36 = scmp.eq.s32.totalorder %s19, 1
      %p37 = por %p35, %p36
      %p38 = scmp.ne.s32.totalorder %s27, %s28
      %p39 = scmp.eq.s32.totalorder %s19, 0
      %p40 = por %p38, %p39
      %p41 = scmp.ne.s32.totalorder %s27, %s28
      %p42 = scmp.eq.s32.totalorder %s20, 1
      %p43 = por %p41, %p42
      %p45 = scmp.ne.s32.totalorder %s28, %s44
      %p46 = scmp.eq.s32.totalorder %s20, 0
      %p47 = por %p45, %p46
      %s49 = sadd.s32 %s48, 1
      %p52 = scmp.eq.s32.totalorder %s14, 1
      %p53 = scmp.ne.s32.totalorder %s48, %s50
      %p54 = scmp.eq.s32.totalorder %s14, 0
      %p55 = por %p53, %p54
      %p56 = scmp.ne.s32.totalorder %s48, %s50
      %p57 = scmp.eq.s32.totalorder %s19, 1
      %p58 = por %p56, %p57
      %p59 = scmp.ne.s32.totalorder %s50, %s51
      %p60 = scmp.eq.s32.totalorder %s19, 0
      %p61 = por %p59, %p60
      %p62 = scmp.ne.s32.totalorder %s50, %s51
      %p63 = scmp.eq.s32.totalorder %s20, 1
      %p64 = por %p62, %p63
      %p66 = scmp.ne.s32.totalorder %s51, %s65
      %p67 = scmp.eq.s32.totalorder %s20, 0
      %p68 = por %p66, %p67
      %s70 = sadd.s32 %s69, 1
      %p73 = scmp.eq.s32.totalorder %s14, 1
      %p74 = scmp.ne.s32.totalorder %s69, %s71
      %p75 = scmp.eq.s32.totalorder %s14, 0
      %p76 = por %p74, %p75
      %p77 = scmp.ne.s32.totalorder %s69, %s71
      %p78 = scmp.eq.s32.totalorder %s19, 1
      %p79 = por %p77, %p78
      %p80 = scmp.ne.s32.totalorder %s71, %s72
      %p81 = scmp.eq.s32.totalorder %s19, 0
      %p82 = por %p80, %p81
      %p83 = scmp.ne.s32.totalorder %s71, %s72
      %p84 = scmp.eq.s32.totalorder %s20, 1
      %p85 = por %p83, %p84
      %p87 = scmp.ne.s32.totalorder %s72, %s86
      %p88 = scmp.eq.s32.totalorder %s20, 0
      %p89 = por %p87, %p88
      %s91 = sadd.s32 %s90, 1
      %p94 = scmp.eq.s32.totalorder %s14, 1
      %p95 = scmp.ne.s32.totalorder %s90, %s92
      %p96 = scmp.eq.s32.totalorder %s14, 0
      %p97 = por %p95, %p96
      %p98 = scmp.ne.s32.totalorder %s90, %s92
      %p99 = scmp.eq.s32.totalorder %s19, 1
      %p100 = por %p98, %p99
      %p101 = scmp.ne.s32.totalorder %s92, %s93
      %p102 = scmp.eq.s32.totalorder %s19, 0
      %p103 = por %p101, %p102
      %p104 = scmp.ne.s32.totalorder %s92, %s93
      %p105 = scmp.eq.s32.totalorder %s20, 1
      %p106 = por %p104, %p105
      %p108 = scmp.ne.s32.totalorder %s93, %s107
      %p109 = scmp.eq.s32.totalorder %s20, 0
      %p110 = por %p108, %p109
      %s112 = sadd.s32 %s111, 1
      %p115 = scmp.eq.s32.totalorder %s14, 1
      %p116 = scmp.ne.s32.totalorder %s111, %s113
      %p117 = scmp.eq.s32.totalorder %s14, 0
      %p118 = por %p116, %p117
      %p119 = scmp.ne.s32.totalorder %s111, %s113
      %p120 = scmp.eq.s32.totalorder %s19, 1
      %p121 = por %p119, %p120
      %p122 = scmp.ne.s32.totalorder %s113, %s114
      %p123 = scmp.eq.s32.totalorder %s19, 0
      %p124 = por %p122, %p123
      %p125 = scmp.ne.s32.totalorder %s113, %s114
      %p126 = scmp.eq.s32.totalorder %s20, 1
      %p127 = por %p125, %p126
      %p129 = scmp.ne.s32.totalorder %s114, %s128
      %p130 = scmp.eq.s32.totalorder %s20, 0
      %p131 = por %p129, %p130
      %s132 = ssub.s32 %s14, %s21
      %p133 = scmp.eq.s32.totalorder %s132, 0
      %s135 = sadd.s32 %s134, 1
      %s136 = scalar_select %p133, %s134, %s135
      %p139 = pneg %p133
      %p140 = scmp.eq.s32.totalorder %s14, 1
      %p141 = por %p139, %p140
      %p142 = scmp.ne.s32.totalorder %s134, %s137
      %p143 = scmp.eq.s32.totalorder %s14, 0
      %p144 = por %p142, %p143
      %p145 = scmp.ne.s32.totalorder %s134, %s137
      %p146 = scmp.eq.s32.totalorder %s19, 1
      %p147 = por %p145, %p146
      %p148 = scmp.ne.s32.totalorder %s137, %s138
      %p149 = scmp.eq.s32.totalorder %s19, 0
      %p150 = por %p148, %p149
      %p151 = scmp.ne.s32.totalorder %s137, %s138
      %p152 = scmp.eq.s32.totalorder %s20, 1
      %p153 = por %p151, %p152
      %p155 = scmp.ne.s32.totalorder %s138, %s154
      %p156 = scmp.eq.s32.totalorder %s20, 0
      %p157 = por %p155, %p156
      %p158 = scmp.le.s32.totalorder 1, %s14
      %p159 = scmp.lt.s32.totalorder %s14, 3
      %p160 = pnand %p158, %p159
      %p161 = pneg %p160
      // Predicated region
      $region9: #{tpu_custom_call.1} parent=5 // pred_check
        _
      $region10: #{tpu_custom_call.1} parent=5 // pred_check_branch
        %163 = sbr.rel (%p160) target = $region12
      $region11: #{tpu_custom_call.1} parent=5 // pred_region
        %s164 = ssub.s32 %s14, 1
        // Predicated region
        $region13: #{tpu_custom_call.1} parent=11 // pred_check
          %p165 = pneg %p61
        $region14: #{tpu_custom_call.1} parent=11 // pred_check_branch
          %167 = sbr.rel (%p165) target = $region16
        $region15: #{tpu_custom_call.1} parent=11 // pred_region
          _
        $region16: #{tpu_custom_call.1} parent=11 // pred_fallthru
          _
        // Predicated region
        $region17: #{tpu_custom_call.1} parent=11 // pred_check
          %p168 = pneg %p82
        $region18: #{tpu_custom_call.1} parent=11 // pred_check_branch
          %170 = sbr.rel (%p168) target = $region20
        $region19: #{tpu_custom_call.1} parent=11 // pred_region
          _
        $region20: #{tpu_custom_call.1} parent=11 // pred_fallthru
          _
        // Predicated region
        $region21: #{tpu_custom_call.1} parent=11 // pred_check
          %p171 = pneg %p103
        $region22: #{tpu_custom_call.1} parent=11 // pred_check_branch
          %173 = sbr.rel (%p171) target = $region24
        $region23: #{tpu_custom_call.1} parent=11 // pred_region
          _
        $region24: #{tpu_custom_call.1} parent=11 // pred_fallthru
          _
        // Predicated region
        $region25: #{tpu_custom_call.1} parent=11 // pred_check
          %p174 = pneg %p124
        $region26: #{tpu_custom_call.1} parent=11 // pred_check_branch
          %176 = sbr.rel (%p174) target = $region28
        $region27: #{tpu_custom_call.1} parent=11 // pred_region
          _
        $region28: #{tpu_custom_call.1} parent=11 // pred_fallthru
          _
      $region12: #{tpu_custom_call.1} parent=5 // pred_fallthru
        _
      %p177 = scmp.lt.s32.totalorder %s14, 2
      // Predicated region
      $region29: #{tpu_custom_call.1} parent=5 // pred_check
        %p178 = pneg %p177
      $region30: #{tpu_custom_call.1} parent=5 // pred_check_branch
        %180 = sbr.rel (%p178) target = $region32
      $region31: #{tpu_custom_call.1} parent=5 // pred_region
        // Predicated region
        $region33: #{tpu_custom_call.1} parent=31 // pred_check
          %p181 = pneg %p34
        $region34: #{tpu_custom_call.1} parent=31 // pred_check_branch
          %183 = sbr.rel (%p181) target = $region36
        $region35: #{tpu_custom_call.1} parent=31 // pred_region
          %p184 = scmp.lt.s32.totalorder %s14, 1
          %s185 = scalar_select %p184, %s14, 1
          %s186 = smul.addr %s185, 8
          %s187 = scalar_lea.vmem %s0, %s186
        $region36: #{tpu_custom_call.1} parent=31 // pred_fallthru
          _
      $region32: #{tpu_custom_call.1} parent=5 // pred_fallthru
        _
      %p188 = scmp.le.s32.totalorder 1, %s14
      %p189 = scmp.lt.s32.totalorder %s14, 3
      %p190 = pnand %p188, %p189
      %p191 = pneg %p190
      // Predicated region
      $region37: #{tpu_custom_call.1} parent=5 // pred_check
        _
      $region38: #{tpu_custom_call.1} parent=5 // pred_check_branch
        %193 = sbr.rel (%p190) target = $region40
      $region39: #{tpu_custom_call.1} parent=5 // pred_region
        %s194 = ssub.s32 %s14, 1
        %p195 = scmp.lt.s32.totalorder %s19, 1
        %s196 = scalar_select %p195, %s19, 1
        %s197 = smul.addr %s196, 8
        %s198 = scalar_lea.vmem %s0, %s197
        %p199 = pneg %p40
        %p200 = pneg %p37
        %p201 = pneg %p61
        %p202 = pneg %p58
        %p203 = pneg %p82
        %p204 = pneg %p79
        %p205 = pneg %p103
        %p206 = pneg %p100
        %p207 = pneg %p124
        %p208 = pneg %p121
        %p209 = pneg %p150
        %p210 = pneg %p147
        %s211 = sand.u32 %s137, 1
        %s212 = scalar_lea.sflag [#allocation3], %s211
        %s213 = sand.u32 %s137, 1
        %s214 = smul.addr %s213, 8
        %s215 = scalar_lea.vmem [#allocation2], %s214
        %p216 = scmp.lt.s32.totalorder %s19, 1
        %s217 = scalar_select %p216, %s19, 1
        %s218 = smul.addr %s217, 8
        %s219 = scalar_lea.vmem %s0, %s218
        %v220 = vld [vmem:[%s219] sm:$0xff]
        %v221 = vld [vmem:[%s1] sm:$0xff]
        %v222 = vld [vmem:[%s1 + $0x8] sm:$0xff]
        %v223 = vld [vmem:[%s1 + $0x10] sm:$0xff]
        %v224 = vld [vmem:[%s1 + $0x18] sm:$0xff]
        %v225 = vld [vmem:[%s1 + $0x20] sm:$0xff]
        %v226 = vld [vmem:[%s1 + $0x28] sm:$0xff]
        %v227 = vld [vmem:[%s1 + $0x30] sm:$0xff]
        %v228 = vld [vmem:[%s1 + $0x38] sm:$0xff]
        %v229 = vld [vmem:[%s2] sm:$0x3]
        %v231 = vlaneseq
        %v232 = vshrl.u32 %v231, 7
        %v233 = vsub.s32 0, %v232
        %v234 = vrot.slane %v229, %v233
        %v235 = vlaneseq
        %v236 = vshrl.u32 %v235, 7
        %v237 = vsub.s32 1, %v236
        %v238 = vrot.slane %v229, %v237
        %vm241 = vcmask 261120
        %v243 = vsel %vm241, %v220, 0
        %245 = vmatprep.subr.mxu0 %v222
        %246 = vmatpush1.msra.mxu0 %v221
        %247 = vmatprep.subr.mxu0 %v224
        %248 = vmatpush1.msra.mxu0 %v223
        %249 = vmatprep.subr.mxu0 %v226
        %250 = vmatpush1.msra.mxu0 %v225
        %251 = vmatprep.subr.mxu0 %v228
        %252 = vmatpush1.msra.mxu0 %v227
        %253 = vmatprep.subr.mxu0 0.0
        %254 = vmatpush1.msra.mxu0 0.0
        %255 = vmatprep.subr.mxu0 0.0
        %256 = vmatpush1.msra.mxu0 0.0
        %257 = vmatprep.subr.mxu0 0.0
        %258 = vmatpush1.msra.mxu0 0.0
        %259 = vmatprep.subr.mxu0 0.0
        %260 = vmatpush1.msra.mxu0 0.0
        %261 = vmatprep.subr.mxu0 0.0
        %262 = vmatpush1.msra.mxu0 0.0
        %263 = vmatprep.subr.mxu0 0.0
        %264 = vmatpush1.msra.mxu0 0.0
        %265 = vmatprep.subr.mxu0 0.0
        %266 = vmatpush1.msra.mxu0 0.0
        %267 = vmatprep.subr.mxu0 0.0
        %268 = vmatpush1.msra.mxu0 0.0
        %269 = vmatprep.subr.mxu0 0.0
        %270 = vmatpush1.msra.mxu0 0.0
        %271 = vmatprep.subr.mxu0 0.0
        %272 = vmatpush1.msra.mxu0 0.0
        %273 = vmatprep.subr.mxu0 0.0
        %274 = vmatpush1.msra.mxu0 0.0
        %275 = vmatprep.subr.mxu0 0.0
        %276 = vmatpush1.msra.mxu0 0.0
        %277 = vmatprep.subr.mxu0 0.0
        %278 = vmatpush1.msra.mxu0 0.0
        %279 = vmatprep.subr.mxu0 0.0
        %280 = vmatpush1.msra.mxu0 0.0
        %281 = vmatprep.subr.mxu0 0.0
        %282 = vmatpush1.msra.mxu0 0.0
        %283 = vmatprep.subr.mxu0 0.0
        %284 = vmatpush1.msra.mxu0 0.0
        %285 = vmatprep.subr.mxu0 0.0
        %286 = vmatpush1.msra.mxu0 0.0
        %287 = vmatprep.subr.mxu0 0.0
        %288 = vmatpush1.msra.mxu0 0.0
        %289 = vmatprep.subr.mxu0 0.0
        %290 = vmatpush1.msra.mxu0 0.0
        %291 = vmatprep.subr.mxu0 0.0
        %292 = vmatpush1.msra.mxu0 0.0
        %293 = vmatprep.subr.mxu0 0.0
        %294 = vmatpush1.msra.mxu0 0.0
        %295 = vmatprep.subr.mxu0 0.0
        %296 = vmatpush1.msra.mxu0 0.0
        %297 = vmatprep.subr.mxu0 0.0
        %298 = vmatpush1.msra.mxu0 0.0
        %299 = vmatprep.subr.mxu0 0.0
        %300 = vmatpush1.msra.mxu0 0.0
        %301 = vmatprep.subr.mxu0 0.0
        %302 = vmatpush1.msra.mxu0 0.0
        %303 = vmatprep.subr.mxu0 0.0
        %304 = vmatpush1.msra.mxu0 0.0
        %305 = vmatprep.subr.mxu0 0.0
        %306 = vmatpush1.msra.mxu0 0.0
        %307 = vmatprep.subr.mxu0 0.0
        %308 = vmatpush1.msra.mxu0 0.0
        %309 = vmatprep.mubr.f32.mxu0 0.0
        %310 = vmatmul.mubr.f32.gmra.mrb[0].mxu0 %v243
        %v311 = vpop.f32.mrb[0].mxu0
        %v312 = vadd.f32 %v234, %v311
        %v313 = vpop.f32.mrb[0].mxu0
        %v314 = vadd.f32 %v238, %v313
        %315 = vdwg.mxu0
        %v316 = vmin.f32 %v312, 0.0
        %v317 = vand.u32 2147483647, %v312
        %v318 = vsub.f32 0.0, %v317
        %v319 = vmul.f32 %v318, 1.442695
        %v320 = vpow.pop %v319
        %v321 = vadd.f32 %v320, 1.0
        %v322 = vlog2.pop %v321
        %v323 = vmul.f32 %v322, 0.6931472
        %v324 = vsub.f32 %v316, %v323
        %v325 = vld [vmem:[%s3] sm:$0xff]
        %v326 = vld [vmem:[%s3 + $0x8] sm:$0xff]
        %v327 = vld [vmem:[%s3 + $0x10] sm:$0xff]
        %v328 = vld [vmem:[%s3 + $0x18] sm:$0xff]
        %v329 = vld [vmem:[%s3 + $0x20] sm:$0xff]
        %v330 = vld [vmem:[%s3 + $0x28] sm:$0xff]
        %v331 = vld [vmem:[%s3 + $0x30] sm:$0xff]
        %v332 = vld [vmem:[%s3 + $0x38] sm:$0xff]
        %v333 = vld [vmem:[%s3 + $0x40] sm:$0xff]
        %v334 = vld [vmem:[%s3 + $0x48] sm:$0xff]
        %v335 = vld [vmem:[%s3 + $0x50] sm:$0xff]
        %v336 = vld [vmem:[%s3 + $0x58] sm:$0xff]
        %v337 = vld [vmem:[%s3 + $0x60] sm:$0xff]
        %v338 = vld [vmem:[%s3 + $0x68] sm:$0xff]
        %v339 = vld [vmem:[%s3 + $0x70] sm:$0xff]
        %v340 = vld [vmem:[%s3 + $0x78] sm:$0xff]
        %v341 = vld [vmem:[%s3 + $0x80] sm:$0xff]
        %v342 = vld [vmem:[%s3 + $0x88] sm:$0xff]
        %v343 = vld [vmem:[%s3 + $0x90] sm:$0xff]
        %v344 = vld [vmem:[%s3 + $0x98] sm:$0xff]
        %v345 = vld [vmem:[%s3 + $0xa0] sm:$0xff]
        %v346 = vld [vmem:[%s3 + $0xa8] sm:$0xff]
        %v347 = vld [vmem:[%s3 + $0xb0] sm:$0xff]
        %v348 = vld [vmem:[%s3 + $0xb8] sm:$0xff]
        %v349 = vld [vmem:[%s3 + $0xc0] sm:$0xff]
        %v350 = vld [vmem:[%s3 + $0xc8] sm:$0xff]
        %v351 = vld [vmem:[%s3 + $0xd0] sm:$0xff]
        %v352 = vld [vmem:[%s3 + $0xd8] sm:$0xff]
        %v353 = vld [vmem:[%s3 + $0xe0] sm:$0xff]
        %v354 = vld [vmem:[%s3 + $0xe8] sm:$0xff]
        %v355 = vld [vmem:[%s3 + $0xf0] sm:$0xff]
        %v356 = vld [vmem:[%s3 + $0xf8] sm:$0xff]
        %357 = vmatprep.subr.mxu0 0.0
        %358 = vmatpush1.msra.mxu0 %v325
        %359 = vmatprep.subr.mxu0 0.0
        %360 = vmatpush1.msra.mxu0 %v326
        %361 = vmatprep.subr.mxu0 0.0
        %362 = vmatpush1.msra.mxu0 %v327
        %363 = vmatprep.subr.mxu0 0.0
        %364 = vmatpush1.msra.mxu0 %v328
        %365 = vmatprep.subr.mxu0 0.0
        %366 = vmatpush1.msra.mxu0 %v329
        %367 = vmatprep.subr.mxu0 0.0
        %368 = vmatpush1.msra.mxu0 %v330
        %369 = vmatprep.subr.mxu0 0.0
        %370 = vmatpush1.msra.mxu0 %v331
        %371 = vmatprep.subr.mxu0 0.0
        %372 = vmatpush1.msra.mxu0 %v332
        %373 = vmatprep.subr.mxu0 0.0
        %374 = vmatpush1.msra.mxu0 %v333
        %375 = vmatprep.subr.mxu0 0.0
        %376 = vmatpush1.msra.mxu0 %v334
        %377 = vmatprep.subr.mxu0 0.0
        %378 = vmatpush1.msra.mxu0 %v335
        %379 = vmatprep.subr.mxu0 0.0
        %380 = vmatpush1.msra.mxu0 %v336
        %381 = vmatprep.subr.mxu0 0.0
        %382 = vmatpush1.msra.mxu0 %v337
        %383 = vmatprep.subr.mxu0 0.0
        %384 = vmatpush1.msra.mxu0 %v338
        %385 = vmatprep.subr.mxu0 0.0
        %386 = vmatpush1.msra.mxu0 %v339
        %387 = vmatprep.subr.mxu0 0.0
        %388 = vmatpush1.msra.mxu0 %v340
        %389 = vmatprep.subr.mxu0 0.0
        %390 = vmatpush1.msra.mxu0 %v341
        %391 = vmatprep.subr.mxu0 0.0
        %392 = vmatpush1.msra.mxu0 %v342
        %393 = vmatprep.subr.mxu0 0.0
        %394 = vmatpush1.msra.mxu0 %v343
        %395 = vmatprep.subr.mxu0 0.0
        %396 = vmatpush1.msra.mxu0 %v344
        %397 = vmatprep.subr.mxu0 0.0
        %398 = vmatpush1.msra.mxu0 %v345
        %399 = vmatprep.subr.mxu0 0.0
        %400 = vmatpush1.msra.mxu0 %v346
        %401 = vmatprep.subr.mxu0 0.0
        %402 = vmatpush1.msra.mxu0 %v347
        %403 = vmatprep.subr.mxu0 0.0
        %404 = vmatpush1.msra.mxu0 %v348
        %405 = vmatprep.subr.mxu0 0.0
        %406 = vmatpush1.msra.mxu0 %v349
        %407 = vmatprep.subr.mxu0 0.0
        %408 = vmatpush1.msra.mxu0 %v350
        %409 = vmatprep.subr.mxu0 0.0
        %410 = vmatpush1.msra.mxu0 %v351
        %411 = vmatprep.subr.mxu0 0.0
        %412 = vmatpush1.msra.mxu0 %v352
        %413 = vmatprep.subr.mxu0 0.0
        %414 = vmatpush1.msra.mxu0 %v353
        %415 = vmatprep.subr.mxu0 0.0
        %416 = vmatpush1.msra.mxu0 %v354
        %417 = vmatprep.subr.mxu0 0.0
        %418 = vmatpush1.msra.mxu0 %v355
        %419 = vmatprep.subr.mxu0 0.0
        %420 = vmatpush1.msra.mxu0 %v356
        %421 = vmatprep.mubr.f32.mxu0 %v312
        %422 = vmatmul.mubr.f32.gmra.mrb[0].mxu0 %v324
        %v423 = vpop.f32.mrb[0].mxu0
        %v424 = vadd.f32 0.0, %v423
        %v425 = vpop.f32.mrb[0].mxu0
        %426 = vdwg.mxu0
        %v427 = vmul.f32 %v424, 1.442695
        %v428 = vpow.pop %v427
        %v429 = vmul.f32 %v314, %v428
        %v430 = vld [vmem:[%s4] sm:$0xff]
        %v431 = vld [vmem:[%s4 + $0x8] sm:$0xff]
        %v432 = vld [vmem:[%s4 + $0x10] sm:$0xff]
        %v433 = vld [vmem:[%s4 + $0x18] sm:$0xff]
        %v435 = vsel %vm241, %v429, 0
        %437 = vmatprep.subr.mxu0 0.0
        %438 = vmatpush1.msra.mxu0 %v430
        %439 = vmatprep.subr.mxu0 0.0
        %440 = vmatpush1.msra.mxu0 %v431
        %441 = vmatprep.subr.mxu0 0.0
        %442 = vmatpush1.msra.mxu0 %v432
        %443 = vmatprep.subr.mxu0 0.0
        %444 = vmatpush1.msra.mxu0 %v433
        %445 = vmatprep.subr.mxu0 0.0
        %446 = vmatpush1.msra.mxu0 0.0
        %447 = vmatprep.subr.mxu0 0.0
        %448 = vmatpush1.msra.mxu0 0.0
        %449 = vmatprep.subr.mxu0 0.0
        %450 = vmatpush1.msra.mxu0 0.0
        %451 = vmatprep.subr.mxu0 0.0
        %452 = vmatpush1.msra.mxu0 0.0
        %453 = vmatprep.subr.mxu0 0.0
        %454 = vmatpush1.msra.mxu0 0.0
        %455 = vmatprep.subr.mxu0 0.0
        %456 = vmatpush1.msra.mxu0 0.0
        %457 = vmatprep.subr.mxu0 0.0
        %458 = vmatpush1.msra.mxu0 0.0
        %459 = vmatprep.subr.mxu0 0.0
        %460 = vmatpush1.msra.mxu0 0.0
        %461 = vmatprep.subr.mxu0 0.0
        %462 = vmatpush1.msra.mxu0 0.0
        %463 = vmatprep.subr.mxu0 0.0
        %464 = vmatpush1.msra.mxu0 0.0
        %465 = vmatprep.subr.mxu0 0.0
        %466 = vmatpush1.msra.mxu0 0.0
        %467 = vmatprep.subr.mxu0 0.0
        %468 = vmatpush1.msra.mxu0 0.0
        %469 = vmatprep.subr.mxu0 0.0
        %470 = vmatpush1.msra.mxu0 0.0
        %471 = vmatprep.subr.mxu0 0.0
        %472 = vmatpush1.msra.mxu0 0.0
        %473 = vmatprep.subr.mxu0 0.0
        %474 = vmatpush1.msra.mxu0 0.0
        %475 = vmatprep.subr.mxu0 0.0
        %476 = vmatpush1.msra.mxu0 0.0
        %477 = vmatprep.subr.mxu0 0.0
        %478 = vmatpush1.msra.mxu0 0.0
        %479 = vmatprep.subr.mxu0 0.0
        %480 = vmatpush1.msra.mxu0 0.0
        %481 = vmatprep.subr.mxu0 0.0
        %482 = vmatpush1.msra.mxu0 0.0
        %483 = vmatprep.subr.mxu0 0.0
        %484 = vmatpush1.msra.mxu0 0.0
        %485 = vmatprep.subr.mxu0 0.0
        %486 = vmatpush1.msra.mxu0 0.0
        %487 = vmatprep.subr.mxu0 0.0
        %488 = vmatpush1.msra.mxu0 0.0
        %489 = vmatprep.subr.mxu0 0.0
        %490 = vmatpush1.msra.mxu0 0.0
        %491 = vmatprep.subr.mxu0 0.0
        %492 = vmatpush1.msra.mxu0 0.0
        %493 = vmatprep.subr.mxu0 0.0
        %494 = vmatpush1.msra.mxu0 0.0
        %495 = vmatprep.subr.mxu0 0.0
        %496 = vmatpush1.msra.mxu0 0.0
        %497 = vmatprep.subr.mxu0 0.0
        %498 = vmatpush1.msra.mxu0 0.0
        %499 = vmatprep.subr.mxu0 0.0
        %500 = vmatpush1.msra.mxu0 0.0
        %501 = vmatprep.mubr.f32.mxu0 0.0
        %502 = vmatmul.mubr.f32.gmra.mrb[0].mxu0 %v435
        %v503 = vpop.f32.mrb[0].mxu0
        %v504 = vadd.f32 0.0, %v503
        %v505 = vpop.f32.mrb[0].mxu0
        %506 = vdwg.mxu0
        %507 = vst [vmem:[%s215] sm:$0xff] %v504
        %s508 = sand.u32 %s137, 1
        %s509 = scalar_lea.sflag [#allocation3], %s508
        %s510 = sand.u32 %s137, 1
        %s511 = smul.addr %s510, 8
        %s512 = scalar_lea.vmem [#allocation2], %s511
        // Predicated region
        $region41: #{tpu_custom_call.1} parent=39 // pred_check
          %p513 = pneg %p147
        $region42: #{tpu_custom_call.1} parent=39 // pred_check_branch
          %515 = sbr.rel (%p513) target = $region44
        $region43: #{tpu_custom_call.1} parent=39 // pred_region
          %s517 = ssub.s32 128, 128
          %518 = vsyncadd %s509, %s517
          %s519 = smul.addr %s19, 128
          %s520 = scalar_lea.hbm %s5, %s519
          %s522 = sshll.u32 %s512, 4
          %s523 = int_to_ptr.vmem [resolvable:$true] %s522
          %525 = dma.vmem_to_hbm [thread:$0]  %s523, 128, %s520, %s509
        $region44: #{tpu_custom_call.1} parent=39 // pred_fallthru
          _
      $region40: #{tpu_custom_call.1} parent=5 // pred_fallthru
        _
      %p526 = scmp.le.s32.totalorder 2, %s14
      // Predicated region
      $region45: #{tpu_custom_call.1} parent=5 // pred_check
        %p527 = pneg %p526
      $region46: #{tpu_custom_call.1} parent=5 // pred_check_branch
        %529 = sbr.rel (%p527) target = $region48
      $region47: #{tpu_custom_call.1} parent=5 // pred_region
        %s530 = ssub.s32 %s14, 2
        // Predicated region
        $region49: #{tpu_custom_call.1} parent=47 // pred_check
          %p531 = pneg %p153
        $region50: #{tpu_custom_call.1} parent=47 // pred_check_branch
          %533 = sbr.rel (%p531) target = $region52
        $region51: #{tpu_custom_call.1} parent=47 // pred_region
          %s534 = sand.u32 %s138, 1
          %s535 = scalar_lea.sflag [#allocation3], %s534
          %s536 = sand.u32 %s138, 1
          %s537 = smul.addr %s536, 8
          %s538 = scalar_lea.vmem [#allocation2], %s537
          %539 = dma.done %s535, 128
        $region52: #{tpu_custom_call.1} parent=47 // pred_fallthru
          _
      $region48: #{tpu_custom_call.1} parent=5 // pred_fallthru
        _
    $region6: #{tpu_custom_call.1} parent=1 // loop_footer
      %s18 = sadd.s32 1, %s14
    $region7: #{tpu_custom_call.1} parent=1 // loop_footer_branch
      %13 = sbr.rel target = $region3
    $region8: #{tpu_custom_call.1} parent=1 // loop_exit
      _
    %540 = vsyncpa [#allocation3], 1
    %s541 = scalar_lea.sflag [#allocation3], 1
    %542 = vsyncpa %s541, 1

</llo_original>
